<compile_context>
chip_gen: v6e
topology: v6e:2x2x1
jax: 0.10.0
libtpu: 0.0.40
codegen_flags: <defaults>
</compile_context>

<pallas_src>
import functools
import math

import jax
import jax.numpy as jnp
from jax.experimental import pallas as pl
from jax.experimental.pallas import tpu as pltpu

GAMMA = 2                # BCEFocalLoss default gamma (== 2 -> explicit square)
WEIGHTS = (1.0, 1.0)     # BCEFocal2WayLoss default weights=[1, 1]

_MIB = 1 << 20


def _round_up(x, m):
    return (x + m - 1) // m * m


def _vmem_capacity_bytes():
    try:
        return int(pltpu.get_tpu_info().vmem_capacity_bytes)
    except Exception:
        return 64 * _MIB     # conservative fallback (v7x has the smallest VMEM)


# -----------------------------------------------------------------------------
# Kernel 1: per-block max over the folded time axis (the HBM-bound part).
# -----------------------------------------------------------------------------
def _block_max_kernel(frame_ref, out_ref, *, rows_total, row_block, needs_mask):
    """frame_ref: (B, row_block, L) lane-dense block; out_ref: (1, B, L)."""
    blk = frame_ref[...]

    def _write(x):
        out_ref[...] = jnp.max(x, axis=1)[None].astype(out_ref.dtype)

    if not needs_mask:
        _write(blk)
    else:
        r = pl.program_id(0)
        is_tail = r == pl.num_programs(0) - 1

        @pl.when(jnp.logical_not(is_tail))
        def _():
            _write(blk)

        @pl.when(is_tail)
        def _():
            # Rows past the array extent hold undefined data; mask them out.
            valid = rows_total - r * row_block
            row_ids = jax.lax.broadcasted_iota(
                jnp.int32, (blk.shape[1], blk.shape[2]), 0)
            neg_inf = jnp.asarray(-jnp.inf, dtype=blk.dtype)
            _write(jnp.where((row_ids < valid)[None], blk, neg_inf))


# -----------------------------------------------------------------------------
# Kernel 2: tiny focal-BCE epilogue on (B, C) data (runs once).
# -----------------------------------------------------------------------------
def _focal_elem(x, t):
    """where(t >= 0.5, (1-p)^2, p^2) * BCEWithLogits(x, t), elementwise, f32."""
    e = jnp.exp(-jnp.abs(x))
    bce = jnp.maximum(x, 0.0) - x * t + jnp.log1p(e)            # stable BCE w/ logits
    p = jnp.where(x >= 0.0, 1.0 / (1.0 + e), e / (1.0 + e))     # sigmoid(x)
    mod = jnp.where(t >= 0.5, 1.0 - p, p)
    return (mod * mod) * bce                                    # gamma == 2


def _epilogue_kernel(logit_ref, fmax_ref, target_ref, out_ref, *, w0, w1, inv_n):
    logit = logit_ref[...].astype(jnp.float32)
    fmax = fmax_ref[...].astype(jnp.float32)
    target = target_ref[...].astype(jnp.float32)
    combined = (w0 * _focal_elem(logit, target)
                + w1 * _focal_elem(fmax, target))
    out_ref[0, 0] = jnp.sum(combined) * inv_n


# -----------------------------------------------------------------------------
# Wrapper.
# -----------------------------------------------------------------------------
def bce_focal_2way_loss(logit, framewise_logit, target_weak, *,
                        weights=WEIGHTS, row_block=None):
    """weights[0]*focal(logit, target) + weights[1]*focal(max_T(framewise), target)."""
    B, T, C = framewise_logit.shape
    assert logit.shape == (B, C) and target_weak.shape == (B, C)

    # ---- lane-dense folding: (B, T, C) -> (B, R, L) with L = F*C % 128 == 0.
    F = 128 // math.gcd(C, 128)
    L = F * C
    if T % F:
        t_pad = _round_up(T, F) - T
        framewise_logit = jnp.pad(
            framewise_logit, ((0, 0), (0, t_pad), (0, 0)),
            constant_values=-jnp.inf)        # -inf never survives the max
    R = framewise_logit.shape[1] // F
    frames = framewise_logit.reshape(B, R, L)

    # ---- row-block sizing from the real (lane-dense) VMEM footprint.
    itemsize = jnp.dtype(frames.dtype).itemsize
    cap = _vmem_capacity_bytes()
    # Per-buffer budget (x2 for double buffering): ~4 MiB on v7x, 8 MiB v5e/v6e.
    budget = max(1 * _MIB, min(cap // 16, 8 * _MIB))
    if row_block is None:
        if R <= 8:
            row_block = R                                   # full-extent block
        else:
            rows_fit = max(budget // (B * L * itemsize), 8)
            row_block = max((min(rows_fit, R) // 8) * 8, 8)
    assert row_block == R or (row_block % 8 == 0 and row_block <= R)
    n_blocks = (R + row_block - 1) // row_block
    needs_mask = n_blocks * row_block != R

    in_block_bytes = B * _round_up(row_block, 8) * L * itemsize
    out_block_bytes = _round_up(B, 8) * L * 4
    vmem_limit = int(min(int(cap * 0.9),
                         2 * in_block_bytes + 2 * out_block_bytes + 8 * _MIB))

    max_kernel = functools.partial(
        _block_max_kernel, rows_total=R, row_block=row_block,
        needs_mask=needs_mask)

    # NOTE: blocks here are sized near the roofline knee; deeper buffering
    # (pl.Buffered(3)) only matters when blocks are tiny, i.e. when the kernel
    # is already negligible, so default double-buffering is kept.
    partial_max = pl.pallas_call(
        max_kernel,
        out_shape=jax.ShapeDtypeStruct((n_blocks, B, L), jnp.float32),
        grid_spec=pltpu.PrefetchScalarGridSpec(
            num_scalar_prefetch=0,
            grid=(n_blocks,),
            in_specs=[pl.BlockSpec((B, row_block, L), lambda r: (0, r, 0))],
            out_specs=pl.BlockSpec((1, B, L), lambda r: (r, 0, 0)),
        ),
        compiler_params=pltpu.CompilerParams(
            # Independent blocks: v7x megacore shards this axis over both TCs.
            dimension_semantics=("parallel",),
            vmem_limit_bytes=vmem_limit,
        ),
    )(frames)

    # Combine block maxima and fold the F interleaved frame copies -> (B, C).
    fmax = jnp.max(jnp.max(partial_max, axis=0).reshape(B, F, C), axis=1)

    epi_kernel = functools.partial(
        _epilogue_kernel, w0=float(weights[0]), w1=float(weights[1]),
        inv_n=1.0 / float(B * C))

    out = pl.pallas_call(
        epi_kernel,
        out_shape=jax.ShapeDtypeStruct((1, 1), jnp.float32),
        grid_spec=pltpu.PrefetchScalarGridSpec(
            num_scalar_prefetch=0,
            grid=(1,),
            in_specs=[pl.BlockSpec((B, C), lambda i: (0, 0))] * 3,
            out_specs=pl.BlockSpec(memory_space=pltpu.MemorySpace.SMEM),
        ),
        compiler_params=pltpu.CompilerParams(
            dimension_semantics=("arbitrary",)),
    )(logit, fmax, target_weak)
    return out[0, 0]


def reference(logit, framewise_logit, target_weak, weights=WEIGHTS):
    """Pure-JAX reference matching the PyTorch semantics."""
    def focal(x, t):
        bce = jnp.maximum(x, 0.0) - x * t + jnp.log1p(jnp.exp(-jnp.abs(x)))
        p = jax.nn.sigmoid(x)
        mod = jnp.where(t >= 0.5, 1.0 - p, p)
        return jnp.mean((mod ** GAMMA) * bce)

    fm = jnp.max(framewise_logit, axis=1)
    return weights[0] * focal(logit, target_weak) + weights[1] * focal(fm, target_weak)


if __name__ == "__main__":
    key = jax.random.PRNGKey(0)
    configs = [
        # (B, T, C, row_block override)
        (2, 40, 24, None),    # T % F != 0 -> -inf time padding, R < 8 full-extent block
        (2, 440, 24, 8),      # multi-block grid + masked ragged tail row-block
        (2, 64, 128, None),   # C already lane-aligned (F == 1)
    ]
    for idx, (B, T, C, rb) in enumerate(configs):
        k1, k2, k3 = jax.random.split(jax.random.fold_in(key, idx), 3)
        logit = jax.random.normal(k1, (B, C), dtype=jnp.float32) * 2.0
        framewise_logit = jax.random.normal(k2, (B, T, C), dtype=jnp.float32) * 2.0
        target_weak = (jax.random.uniform(k3, (B, C)) > 0.5).astype(jnp.float32)

        out = bce_focal_2way_loss(logit, framewise_logit, target_weak, row_block=rb)
        out = jax.block_until_ready(out)
        ref = reference(logit, framewise_logit, target_weak)
        assert jnp.allclose(out, ref, atol=1e-4, rtol=1e-4), (idx, out, ref)

    print("KERNEL_OK")
</pallas_src>

<mosaic_0001>
module attributes {stable_mosaic.version = 11 : i64} {
  func.func @_block_max_kernel(%arg0: i32, %arg1: memref<2x3x384xf32, #tpu.memory_space<vmem>>, %arg2: memref<1x2x384xf32, #tpu.memory_space<vmem>>) attributes {dimension_semantics = [#tpu.dimension_semantics<parallel>], iteration_bounds = array<i64: 1>, scalar_prefetch = 0 : i64, scratch_operands = 0 : i64, tpu.core_type = #tpu.core_type<tc>, window_params = [{transform_indices = @transform_0, window_bounds = array<i64: 2, 3, 384>}, {transform_indices = @transform_1, window_bounds = array<i64: 1, 2, 384>}]} {
    %c0 = arith.constant 0 : index
    %c0_0 = arith.constant 0 : index
    %c0_1 = arith.constant 0 : index
    %0 = vector.load %arg1[%c0, %c0_0, %c0_1] : memref<2x3x384xf32, #tpu.memory_space<vmem>>, vector<2x3x384xf32>
    %cst = arith.constant dense<0xFF800000> : vector<2x384xf32>
    %1 = vector.multi_reduction <maximumf>, %0, %cst [1] : vector<2x3x384xf32> to vector<2x384xf32>
    %2 = vector.shape_cast %1 : vector<2x384xf32> to vector<1x2x384xf32>
    %c0_2 = arith.constant 0 : index
    %c0_3 = arith.constant 0 : index
    %c0_4 = arith.constant 0 : index
    %3 = vector.load %arg2[%c0_2, %c0_3, %c0_4] : memref<1x2x384xf32, #tpu.memory_space<vmem>>, vector<1x2x384xf32>
    tpu.vector_store %arg2[%c0_2, %c0_3, %c0_4], %2 {strides = array<i32>} : memref<1x2x384xf32, #tpu.memory_space<vmem>>, vector<1x2x384xf32>,
    return
  }
  func.func @transform_0(%arg0: i32) -> (i32, i32, i32) {
    %c0_i32 = arith.constant 0 : i32
    %c0_i32_0 = arith.constant 0 : i32
    %c0_i32_1 = arith.constant 0 : i32
    return %c0_i32, %arg0, %c0_i32_0 : i32, i32, i32
  }
  func.func @transform_1(%arg0: i32) -> (i32, i32, i32) {
    %c0_i32 = arith.constant 0 : i32
    %c0_i32_0 = arith.constant 0 : i32
    %c0_i32_1 = arith.constant 0 : i32
    return %arg0, %c0_i32, %c0_i32_0 : i32, i32, i32
  }
}

</mosaic_0001>

<llo_original>
// kernel: tpu_custom_call.1
$region0: #{tpu_custom_call.1}
  #allocation0 [shape = 'u32[]', space=smem, size = 0x4, offset = 0x4, fixed_abs, tag = 'smem constant byte address 0x4 - core index']
  #allocation1 [shape = 'u32[144,128]{1,0:T(1,128)}', space=vmem, size = 0x12000, scoped, tag = 'internal scratch']
  %s0 = inlined_call_operand.vmem [shape: f32[2,3,384], index: 0, kind: input, shape index: {}]
  %s1 = inlined_call_operand.hbm [shape: f32[1,2,384], index: 1, kind: output, shape index: {}]
  %s2 = sld [smem:[#allocation0]]
  $region14: #{tpu_custom_call.1} parent=0
    _
  %s4 = ssub.s32 1, %s2
  %s5 = scalar_select 0, %s4, %s2
  $region1: #{tpu_custom_call.1} parent=0
    #allocation2 [shape = 'u8[3072]{0}', space=vmem, size = 0xc00, scoped, tag = 'output window, operand 0, single buffered']
    #allocation3 [shape = 's32[1]{0}', space=sflag, size = 0x4, scoped, tag = 'scoped memory for tpu_custom_call.1']
    %6 = vsyncpa [#allocation3], 0
    // Predicated region
    $region2: #{tpu_custom_call.1} parent=1 // pred_check
      _
    $region3: #{tpu_custom_call.1} parent=1 // pred_check_branch
      %8 = sbr.rel (0) target = $region5
    $region4: #{tpu_custom_call.1} parent=1 // pred_region
      _
    $region5: #{tpu_custom_call.1} parent=1 // pred_fallthru
      _
    %v9 = vld [vmem:[%s0] sm:$0x77]
    %v10 = vld [vmem:[%s0 + $0x8] sm:$0x7]
    %v11 = vld [vmem:[%s0 + $0xc] sm:$0x77]
    %v12 = vld [vmem:[%s0 + $0x14] sm:$0x7]
    %v15 = vcombine.high %v9, %v9
    %v16 = vcombine.high %v11, %v11
    %vm19 = vcmask 1042432
    %v20 = vsel %vm19, %v9, -inf
    %v21 = vrot.slane %v20, 4
    %v22 = vmax.f32 %v20, %v21
    %v23 = vrot.slane %v22, 2
    %v24 = vmax.f32 %v22, %v23
    %v25 = vrot.slane %v24, 1
    %v26 = vmax.f32 %v24, %v25
    %v27 = vsel %vm19, %v15, -inf
    %v28 = vrot.slane %v27, 4
    %v29 = vmax.f32 %v27, %v28
    %v30 = vrot.slane %v29, 2
    %v31 = vmax.f32 %v29, %v30
    %v32 = vrot.slane %v31, 1
    %v33 = vmax.f32 %v31, %v32
    %v34 = vsel %vm19, %v10, -inf
    %v35 = vrot.slane %v34, 4
    %v36 = vmax.f32 %v34, %v35
    %v37 = vrot.slane %v36, 2
    %v38 = vmax.f32 %v36, %v37
    %v39 = vrot.slane %v38, 1
    %v40 = vmax.f32 %v38, %v39
    %v41 = vsel %vm19, %v11, -inf
    %v42 = vrot.slane %v41, 4
    %v43 = vmax.f32 %v41, %v42
    %v44 = vrot.slane %v43, 2
    %v45 = vmax.f32 %v43, %v44
    %v46 = vrot.slane %v45, 1
    %v47 = vmax.f32 %v45, %v46
    %v48 = vsel %vm19, %v16, -inf
    %v49 = vrot.slane %v48, 4
    %v50 = vmax.f32 %v48, %v49
    %v51 = vrot.slane %v50, 2
    %v52 = vmax.f32 %v50, %v51
    %v53 = vrot.slane %v52, 1
    %v54 = vmax.f32 %v52, %v53
    %v55 = vsel %vm19, %v12, -inf
    %v56 = vrot.slane %v55, 4
    %v57 = vmax.f32 %v55, %v56
    %v58 = vrot.slane %v57, 2
    %v59 = vmax.f32 %v57, %v58
    %v60 = vrot.slane %v59, 1
    %v61 = vmax.f32 %v59, %v60
    %v68 = vcombine.low %v26, %v33
    %v70 = vunpack.c.l.s4 1983009808
    %v71 = vunpack.c.0.s8 %v70
    %v72 = vlaneseq
    %v73 = vshrl.u32 %v72, 7
    %v74 = vsub.s32 %v71, %v73
    %v75 = vrot.slane %v68, %v74
    %v77 = vunpack.c.l.s4 1983009808
    %v78 = vunpack.c.0.s8 %v77
    %v79 = vlaneseq
    %v80 = vshrl.u32 %v79, 7
    %v81 = vsub.s32 %v78, %v80
    %v82 = vrot.slane %v40, %v81
    %v83 = vcombine.low %v75, %v82
    %v84 = vcombine.low %v47, %v54
    %v86 = vunpack.c.l.s4 1983009808
    %v87 = vunpack.c.0.s8 %v86
    %v88 = vlaneseq
    %v89 = vshrl.u32 %v88, 7
    %v90 = vsub.s32 %v87, %v89
    %v91 = vrot.slane %v84, %v90
    %v93 = vunpack.c.l.s4 1983009808
    %v94 = vunpack.c.0.s8 %v93
    %v95 = vlaneseq
    %v96 = vshrl.u32 %v95, 7
    %v97 = vsub.s32 %v94, %v96
    %v98 = vrot.slane %v61, %v97
    %v99 = vcombine.low %v91, %v98
    %vm100 = vcmask 1044484
    %v101 = vsel %vm100, %v83, %v83
    %vm102 = vcmask 1046534
    %v103 = vsel %vm102, %v83, %v101
    %v104 = vrot.slane %v99, 7
    %vm105 = vcmask 1041409
    %v106 = vsel %vm105, %v104, %v103
    %vm107 = vcmask 1043459
    %v108 = vsel %vm107, %v104, %v106
    %vm109 = vcmask 1045509
    %v110 = vsel %vm109, %v104, %v108
    %vm111 = vcmask 1047559
    %v112 = vsel %vm111, %v104, %v110
    %114 = vst [vmem:[#allocation2] sm:$0x3f] %v112
    // Predicated region
    $region6: #{tpu_custom_call.1} parent=1 // pred_check
      _
    $region7: #{tpu_custom_call.1} parent=1 // pred_check_branch
      %116 = sbr.rel (0) target = $region9
    $region8: #{tpu_custom_call.1} parent=1 // pred_region
      %s118 = ssub.s32 96, 96
      %119 = vsyncadd [#allocation3], %s118
      %s121 = sshll.u32 [#allocation2], 4
      %s122 = int_to_ptr.vmem [resolvable:$true] %s121
      %124 = dma.vmem_to_hbm [thread:$0]  %s122, 96, %s1, [#allocation3]
    $region9: #{tpu_custom_call.1} parent=1 // pred_fallthru
      _
    // Predicated region
    $region10: #{tpu_custom_call.1} parent=1 // pred_check
      _
    $region11: #{tpu_custom_call.1} parent=1 // pred_check_branch
      %126 = sbr.rel (0) target = $region13
    $region12: #{tpu_custom_call.1} parent=1 // pred_region
      %127 = dma.done [#allocation3], 96
    $region13: #{tpu_custom_call.1} parent=1 // pred_fallthru
      _
    %128 = vsyncpa [#allocation3], 1

</llo_original>
